<compile_context>
chip_gen: v5e
topology: v5e:2x2
jax: 0.10.0
libtpu: 0.0.40
codegen_flags: <defaults>
</compile_context>

<pallas_src>
import functools

import jax
import jax.numpy as jnp
from jax import lax
from jax.experimental import pallas as pl
from jax.experimental.pallas import tpu as pltpu


def _round_up(x, m):
    return (x + m - 1) // m * m


def _conv_block_kernel(x_hbm, w_ref, b_ref, o_ref, xbuf, col, sem, *,
                       tile_m, lt, chunk, tap_offsets, c_in):
    """One (image n, M-tile m) grid step of reflect-pad conv3x3 + bias + ReLU.

    x_hbm : (N, C_in, Lpad) bf16, HBM (pl.ANY)     -- flat padded-image positions.
    w_ref : (C_out, KH*KW*C_in) bf16, VMEM         -- im2col-packed weights.
    b_ref : (C_out, 1) f32, VMEM.
    o_ref : (1, C_out, tile_m) f32                 -- lane-dense output block.
    xbuf  : (2, C_in, lt) bf16 VMEM scratch        -- double-buffered halo'd window.
    col   : (KH*KW*C_in, chunk) bf16 VMEM scratch  -- fused im2col staging.
    sem   : DMA semaphores, shape (2,).
    """
    n = pl.program_id(0)
    m = pl.program_id(1)
    num_m = pl.num_programs(1)
    slot = m % 2

    def window_copy(img, tile, s):
        return pltpu.make_async_copy(
            x_hbm.at[img, :, pl.ds(tile * tile_m, lt)], xbuf.at[s], sem.at[s])

    # Prime the pipeline at the start of each image row.  m == 0 fires on every
    # core even when the batch axis is megacore-sharded, so no core ever waits on
    # a copy that was never started.
    @pl.when(m == 0)
    def _():
        window_copy(n, 0, 0).start()

    # Prefetch the next tile of the same image while computing this one.
    @pl.when(m + 1 < num_m)
    def _():
        window_copy(n, m + 1, 1 - slot).start()

    window_copy(n, m, slot).wait()
    xw = xbuf.at[slot]                                      # (C_in, lt) view

    c_out = o_ref.shape[1]
    bias_tile = jnp.broadcast_to(b_ref[...], (c_out, chunk))  # hoisted broadcast

    for c0 in range(0, tile_m, chunk):
        # Fused im2col: KH*KW shifted (C_in, chunk) copies -> one K=36 contraction.
        for t, off in enumerate(tap_offsets):
            col[t * c_in:(t + 1) * c_in, :] = xw[:, c0 + off:c0 + off + chunk]
        acc = jnp.dot(w_ref[...], col[...], preferred_element_type=jnp.float32)
        acc = acc + bias_tile
        o_ref[0, :, c0:c0 + chunk] = jnp.maximum(acc, 0.0).astype(o_ref.dtype)


def conv2d_block_forward(x, weight, bias, *, padding=1, stride=1,
                         tile_m=8192, compute_dtype=jnp.bfloat16):
    """ReflectionPad2d(padding) -> Conv2d(stride=1, bias=True) -> ReLU.

    x: (N, C_in, H, W) f32; weight: (C_out, C_in, KH, KW); bias: (C_out,).
    """
    # TODO(synk): only the realized Conv2dBlock config (stride=1, dilation=1,
    # groups=1, reflect pad, 'relu', no norm/weight_norm, transpose=False) is lowered.
    assert stride == 1, "this Pallas lowering implements the stride=1 config"
    N, C_in, H, W = x.shape
    C_out, C_in_w, KH, KW = weight.shape
    assert C_in_w == C_in

    # --- glue: ReflectionPad2d + flatten + cast (one fused XLA pass over x) ---
    if padding > 0:
        x = jnp.pad(x, ((0, 0), (0, 0), (padding, padding), (padding, padding)),
                    mode="reflect")
    Hp, Wp = x.shape[2], x.shape[3]
    H_out = Hp - KH + 1
    W_out = Wp - KW + 1

    # Flat-position layout p = h*Wp + w: with stride 1, tap (kh,kw) is a constant
    # shift kh*Wp + kw.  Positions live on the 128-lane axis.
    P = H_out * Wp                          # includes Wp-W_out wrap columns, sliced later
    halo = (KH - 1) * Wp + (KW - 1)
    halo_pad = _round_up(halo, 128)

    TM = min(_round_up(tile_m, 128), _round_up(P, 128))
    if N == 1 and P > 128:
        # Keep at least two grid steps so both v7x TensorCores get work.
        TM = min(TM, _round_up(-(-P // 2), 128))
    num_m = -(-P // TM)
    if TM <= 1024:
        CHUNK = TM
    else:
        CHUNK = next(c for c in (1024, 512, 256, 128) if TM % c == 0)
    LT = TM + halo_pad
    Lpad = _round_up(max(num_m * TM + halo_pad, Hp * Wp), 128)

    x_flat = x.reshape(N, C_in, Hp * Wp)
    x_flat = jnp.pad(x_flat, ((0, 0), (0, 0), (0, Lpad - Hp * Wp)))
    x_flat = x_flat.astype(compute_dtype)

    # Im2col-packed weights: wk[o, (kh*KW+kw)*C_in + c] = weight[o, c, kh, kw].
    wk = weight.transpose(0, 2, 3, 1).reshape(C_out, KH * KW * C_in)
    wk = wk.astype(compute_dtype)
    b_col = bias.reshape(C_out, 1).astype(jnp.float32)

    tap_offsets = tuple(kh * Wp + kw for kh in range(KH) for kw in range(KW))
    kernel = functools.partial(_conv_block_kernel, tile_m=TM, lt=LT, chunk=CHUNK,
                               tap_offsets=tap_offsets, c_in=C_in)

    cost = pl.CostEstimate(
        flops=int(2 * N * H_out * W_out * C_out * C_in * KH * KW),
        transcendentals=0,
        bytes_accessed=int(N * C_in * Lpad * 2          # bf16 input
                           + N * C_out * num_m * TM * 4  # f32 output (dominant)
                           + wk.size * 2 + b_col.size * 4))

    out_flat = pl.pallas_call(
        kernel,
        out_shape=jax.ShapeDtypeStruct((N, C_out, num_m * TM), jnp.float32),
        grid_spec=pltpu.PrefetchScalarGridSpec(
            num_scalar_prefetch=0,
            grid=(N, num_m),
            in_specs=[
                pl.BlockSpec(memory_space=pl.ANY),                     # x stays in HBM
                pl.BlockSpec((C_out, KH * KW * C_in), lambda n, m: (0, 0)),
                pl.BlockSpec((C_out, 1), lambda n, m: (0, 0)),
            ],
            out_specs=pl.BlockSpec((1, C_out, TM), lambda n, m: (n, 0, m)),
            scratch_shapes=[
                pltpu.VMEM((2, C_in, LT), compute_dtype),              # halo'd windows
                pltpu.VMEM((KH * KW * C_in, CHUNK), compute_dtype),    # im2col staging
                pltpu.SemaphoreType.DMA((2,)),
            ]),
        compiler_params=pltpu.CompilerParams(
            dimension_semantics=("parallel", "arbitrary")),
        cost_estimate=cost,
    )(x_flat, wk, b_col)

    # Back to NCHW: free reshape + cheap lane-dim slice (no transpose).
    out = out_flat[:, :, :P].reshape(N, C_out, H_out, Wp)[:, :, :, :W_out]
    return out


def _reference(x, weight, bias, *, padding=1, stride=1, operand_dtype=jnp.float32):
    xp = jnp.pad(x, ((0, 0), (0, 0), (padding, padding), (padding, padding)),
                 mode="reflect")
    y = lax.conv_general_dilated(
        xp.astype(operand_dtype), weight.astype(operand_dtype),
        window_strides=(stride, stride), padding="VALID",
        dimension_numbers=("NCHW", "OIHW", "NCHW"),
        preferred_element_type=jnp.float32)
    y = y + bias.reshape(1, -1, 1, 1).astype(jnp.float32)
    return jnp.maximum(y, 0.0)


if __name__ == "__main__":
    key = jax.random.PRNGKey(0)
    kx, kw_key, kb = jax.random.split(key, 3)

    N, C_in, H, W = 2, 4, 16, 16
    C_out, KH, KW = 8, 3, 3

    x = jax.random.normal(kx, (N, C_in, H, W), dtype=jnp.float32)
    # Deterministic "kaiming-like" init (synthetic params, no checkpoint load).
    fan_in = C_in * KH * KW
    bound = 1.0 / jnp.sqrt(fan_in)
    weight = jax.random.uniform(kw_key, (C_out, C_in, KH, KW),
                                minval=-bound, maxval=bound, dtype=jnp.float32)
    bias = jax.random.uniform(kb, (C_out,), minval=-bound, maxval=bound,
                              dtype=jnp.float32)

    out = conv2d_block_forward(x, weight, bias, padding=1, stride=1)
    out = jax.block_until_ready(out)
    assert out.shape == (N, C_out, H, W), out.shape

    # Exact-operand check: reference conv with the same bf16 operands / f32 accumulation.
    ref_bf16 = _reference(x, weight, bias, padding=1, stride=1,
                          operand_dtype=jnp.bfloat16)
    err_bf16 = float(jnp.max(jnp.abs(out - ref_bf16)))
    assert jnp.allclose(out, ref_bf16, atol=1e-4, rtol=1e-4), err_bf16

    # Loose sanity check against the full-f32 module semantics (bf16 rounding only).
    ref_f32 = _reference(x, weight, bias, padding=1, stride=1,
                         operand_dtype=jnp.float32)
    err_f32 = float(jnp.max(jnp.abs(out - ref_f32)))
    assert jnp.allclose(out, ref_f32, atol=1e-1, rtol=1e-1), err_f32

    print("KERNEL_OK")
</pallas_src>

<mosaic_0001>
module attributes {stable_mosaic.version = 11 : i64} {
  func.func @_conv_block_kernel(%arg0: i32, %arg1: i32, %arg2: memref<2x4x512xbf16, #tpu.memory_space<any>>, %arg3: memref<8x36xbf16, #tpu.memory_space<vmem>>, %arg4: memref<8x1xf32, #tpu.memory_space<vmem>>, %arg5: memref<1x8x384xf32, #tpu.memory_space<vmem>>, %arg6: memref<2x4x512xbf16, #tpu.memory_space<vmem>>, %arg7: memref<36x384xbf16, #tpu.memory_space<vmem>>, %arg8: memref<2x!tpu.dma_semaphore, #tpu.memory_space<semaphore_mem>>) attributes {dimension_semantics = [#tpu.dimension_semantics<parallel>, #tpu.dimension_semantics<arbitrary>], iteration_bounds = array<i64: 2, 1>, scalar_prefetch = 0 : i64, scratch_operands = 3 : i64, tpu.core_type = #tpu.core_type<tc>, window_params = [{}, {pipeline_mode = #tpu.pipeline_mode<synchronous>, transform_indices = @transform_1, window_bounds = array<i64: 8, 36>}, {pipeline_mode = #tpu.pipeline_mode<synchronous>, transform_indices = @transform_2, window_bounds = array<i64: 8, 1>}, {transform_indices = @transform_3, window_bounds = array<i64: 1, 8, 384>}]} {
    %c2_i32 = arith.constant 2 : i32
    %c0_i32 = arith.constant 0 : i32
    %0 = arith.cmpi eq, %c2_i32, %c0_i32 : i32
    %c1_i32 = arith.constant 1 : i32
    %1 = arith.select %0, %c1_i32, %c2_i32 : i32
    %2 = arith.remsi %arg1, %1 : i32
    %c0_i32_0 = arith.constant 0 : i32
    %3 = arith.cmpi ne, %2, %c0_i32_0 : i32
    %c0_i32_1 = arith.constant 0 : i32
    %4 = arith.cmpi slt, %2, %c0_i32_1 : i32
    %c0_i32_2 = arith.constant 0 : i32
    %5 = arith.cmpi slt, %1, %c0_i32_2 : i32
    %6 = arith.xori %4, %5 : i1
    %7 = arith.andi %6, %3 : i1
    %8 = arith.addi %2, %1 : i32
    %9 = arith.select %7, %8, %2 : i32
    %c0_i32_3 = arith.constant 0 : i32
    %10 = arith.cmpi eq, %arg1, %c0_i32_3 : i32
    %11 = arith.extui %10 : i1 to i32
    %c0_i32_4 = arith.constant 0 : i32
    %12 = arith.cmpi ne, %11, %c0_i32_4 : i32
    scf.if %12 {
      %c0_i32_59 = arith.constant 0 : i32
      %c0_i32_60 = arith.constant 0 : i32
      %c0_i32_61 = arith.constant 0 : i32
      %c0_i32_62 = arith.constant 0 : i32
      %72 = tpu.memref_slice %arg2[%arg0, %c0_i32_61, %c0_i32_62] : memref<2x4x512xbf16, #tpu.memory_space<any>> -> memref<1x4x512xbf16, #tpu.memory_space<any>>
      %73 = tpu.memref_squeeze %72 : memref<1x4x512xbf16, #tpu.memory_space<any>> -> memref<4x512xbf16, #tpu.memory_space<any>>
      %c0_i32_63 = arith.constant 0 : i32
      %c0_i32_64 = arith.constant 0 : i32
      %74 = tpu.memref_slice %arg6[%c0_i32_59, %c0_i32_63, %c0_i32_64] : memref<2x4x512xbf16, #tpu.memory_space<vmem>> -> memref<1x4x512xbf16, #tpu.memory_space<vmem>>
      %75 = tpu.memref_squeeze %74 : memref<1x4x512xbf16, #tpu.memory_space<vmem>> -> memref<4x512xbf16, #tpu.memory_space<vmem>>
      %76 = tpu.memref_slice %arg8[%c0_i32_60] : memref<2x!tpu.dma_semaphore, #tpu.memory_space<semaphore_mem>> -> memref<1x!tpu.dma_semaphore, #tpu.memory_space<semaphore_mem>>
      %77 = tpu.memref_squeeze %76 : memref<1x!tpu.dma_semaphore, #tpu.memory_space<semaphore_mem>> -> memref<!tpu.dma_semaphore, #tpu.memory_space<semaphore_mem>>
      tpu.enqueue_dma source(%73 : memref<4x512xbf16, #tpu.memory_space<any>>) target(%75 : memref<4x512xbf16, #tpu.memory_space<vmem>>) target_semaphore(%77 : memref<!tpu.dma_semaphore, #tpu.memory_space<semaphore_mem>>)
    } else {
    }
    %c1_i32_5 = arith.constant 1 : i32
    %13 = arith.addi %arg1, %c1_i32_5 : i32
    %c1_i32_6 = arith.constant 1 : i32
    %14 = arith.cmpi slt, %13, %c1_i32_6 : i32
    %15 = arith.extui %14 : i1 to i32
    %c0_i32_7 = arith.constant 0 : i32
    %16 = arith.cmpi ne, %15, %c0_i32_7 : i32
    scf.if %16 {
      %c1_i32_59 = arith.constant 1 : i32
      %72 = arith.addi %arg1, %c1_i32_59 : i32
      %c1_i32_60 = arith.constant 1 : i32
      %73 = arith.subi %c1_i32_60, %9 : i32
      %c384_i32_61 = arith.constant 384 : i32
      %74 = arith.muli %72, %c384_i32_61 : i32
      %c0_i32_62 = arith.constant 0 : i32
      %75 = tpu.memref_slice %arg2[%arg0, %c0_i32_62, %74] : memref<2x4x512xbf16, #tpu.memory_space<any>> -> memref<1x4x512xbf16, #tpu.memory_space<any>>
      %76 = tpu.memref_squeeze %75 : memref<1x4x512xbf16, #tpu.memory_space<any>> -> memref<4x512xbf16, #tpu.memory_space<any>>
      %c0_i32_63 = arith.constant 0 : i32
      %c0_i32_64 = arith.constant 0 : i32
      %77 = tpu.memref_slice %arg6[%73, %c0_i32_63, %c0_i32_64] : memref<2x4x512xbf16, #tpu.memory_space<vmem>> -> memref<1x4x512xbf16, #tpu.memory_space<vmem>>
      %78 = tpu.memref_squeeze %77 : memref<1x4x512xbf16, #tpu.memory_space<vmem>> -> memref<4x512xbf16, #tpu.memory_space<vmem>>
      %79 = tpu.memref_slice %arg8[%73] : memref<2x!tpu.dma_semaphore, #tpu.memory_space<semaphore_mem>> -> memref<1x!tpu.dma_semaphore, #tpu.memory_space<semaphore_mem>>
      %80 = tpu.memref_squeeze %79 : memref<1x!tpu.dma_semaphore, #tpu.memory_space<semaphore_mem>> -> memref<!tpu.dma_semaphore, #tpu.memory_space<semaphore_mem>>
      tpu.enqueue_dma source(%76 : memref<4x512xbf16, #tpu.memory_space<any>>) target(%78 : memref<4x512xbf16, #tpu.memory_space<vmem>>) target_semaphore(%80 : memref<!tpu.dma_semaphore, #tpu.memory_space<semaphore_mem>>)
    } else {
    }
    %c384_i32 = arith.constant 384 : i32
    %17 = arith.muli %arg1, %c384_i32 : i32
    %c0_i32_8 = arith.constant 0 : i32
    %18 = tpu.memref_slice %arg2[%arg0, %c0_i32_8, %17] : memref<2x4x512xbf16, #tpu.memory_space<any>> -> memref<1x4x512xbf16, #tpu.memory_space<any>>
    %19 = tpu.memref_squeeze %18 : memref<1x4x512xbf16, #tpu.memory_space<any>> -> memref<4x512xbf16, #tpu.memory_space<any>>
    %c0_i32_9 = arith.constant 0 : i32
    %c0_i32_10 = arith.constant 0 : i32
    %20 = tpu.memref_slice %arg6[%9, %c0_i32_9, %c0_i32_10] : memref<2x4x512xbf16, #tpu.memory_space<vmem>> -> memref<1x4x512xbf16, #tpu.memory_space<vmem>>
    %21 = tpu.memref_squeeze %20 : memref<1x4x512xbf16, #tpu.memory_space<vmem>> -> memref<4x512xbf16, #tpu.memory_space<vmem>>
    %22 = tpu.memref_slice %arg8[%9] : memref<2x!tpu.dma_semaphore, #tpu.memory_space<semaphore_mem>> -> memref<1x!tpu.dma_semaphore, #tpu.memory_space<semaphore_mem>>
    %23 = tpu.memref_squeeze %22 : memref<1x!tpu.dma_semaphore, #tpu.memory_space<semaphore_mem>> -> memref<!tpu.dma_semaphore, #tpu.memory_space<semaphore_mem>>
    tpu.wait_dma2 semaphore(%23 : memref<!tpu.dma_semaphore, #tpu.memory_space<semaphore_mem>>) src(%19 : memref<4x512xbf16, #tpu.memory_space<any>>) dst(%21 : memref<4x512xbf16, #tpu.memory_space<vmem>>)
    %c0 = arith.constant 0 : index
    %c0_11 = arith.constant 0 : index
    %24 = vector.load %arg4[%c0, %c0_11] : memref<8x1xf32, #tpu.memory_space<vmem>>, vector<8x1xf32>
    %25 = vector.shape_cast %24 : vector<8x1xf32> to vector<8x1xf32>
    %26 = vector.broadcast %25 : vector<8x1xf32> to vector<8x384xf32>
    %c0_i32_12 = arith.constant 0 : i32
    %c0_i32_13 = arith.constant 0 : i32
    %27 = tpu.memref_slice %arg6[%9, %c0_i32_12, %c0_i32_13] : memref<2x4x512xbf16, #tpu.memory_space<vmem>> -> memref<1x4x512xbf16, #tpu.memory_space<vmem>>
    %28 = tpu.memref_squeeze %27 : memref<1x4x512xbf16, #tpu.memory_space<vmem>> -> memref<4x512xbf16, #tpu.memory_space<vmem>>
    %c0_14 = arith.constant 0 : index
    %c0_15 = arith.constant 0 : index
    %29 = vector.load %28[%c0_14, %c0_15] : memref<4x512xbf16, #tpu.memory_space<vmem>>, vector<4x384xbf16>
    %c0_16 = arith.constant 0 : index
    %c0_17 = arith.constant 0 : index
    %30 = vector.load %arg7[%c0_16, %c0_17] : memref<36x384xbf16, #tpu.memory_space<vmem>>, vector<4x384xbf16>
    tpu.vector_store %arg7[%c0_16, %c0_17], %29 {strides = array<i32>} : memref<36x384xbf16, #tpu.memory_space<vmem>>, vector<4x384xbf16>,
    %c0_i32_18 = arith.constant 0 : i32
    %c0_i32_19 = arith.constant 0 : i32
    %31 = tpu.memref_slice %arg6[%9, %c0_i32_18, %c0_i32_19] : memref<2x4x512xbf16, #tpu.memory_space<vmem>> -> memref<1x4x512xbf16, #tpu.memory_space<vmem>>
    %32 = tpu.memref_squeeze %31 : memref<1x4x512xbf16, #tpu.memory_space<vmem>> -> memref<4x512xbf16, #tpu.memory_space<vmem>>
    %c0_20 = arith.constant 0 : index
    %c1 = arith.constant 1 : index
    %33 = vector.load %32[%c0_20, %c1] : memref<4x512xbf16, #tpu.memory_space<vmem>>, vector<4x384xbf16>
    %c4 = arith.constant 4 : index
    %c0_21 = arith.constant 0 : index
    %34 = vector.load %arg7[%c4, %c0_21] : memref<36x384xbf16, #tpu.memory_space<vmem>>, vector<4x384xbf16>
    tpu.vector_store %arg7[%c4, %c0_21], %33 {strides = array<i32>} : memref<36x384xbf16, #tpu.memory_space<vmem>>, vector<4x384xbf16>,
    %c0_i32_22 = arith.constant 0 : i32
    %c0_i32_23 = arith.constant 0 : i32
    %35 = tpu.memref_slice %arg6[%9, %c0_i32_22, %c0_i32_23] : memref<2x4x512xbf16, #tpu.memory_space<vmem>> -> memref<1x4x512xbf16, #tpu.memory_space<vmem>>
    %36 = tpu.memref_squeeze %35 : memref<1x4x512xbf16, #tpu.memory_space<vmem>> -> memref<4x512xbf16, #tpu.memory_space<vmem>>
    %c0_24 = arith.constant 0 : index
    %c2 = arith.constant 2 : index
    %37 = vector.load %36[%c0_24, %c2] : memref<4x512xbf16, #tpu.memory_space<vmem>>, vector<4x384xbf16>
    %c8 = arith.constant 8 : index
    %c0_25 = arith.constant 0 : index
    %38 = vector.load %arg7[%c8, %c0_25] : memref<36x384xbf16, #tpu.memory_space<vmem>>, vector<4x384xbf16>
    tpu.vector_store %arg7[%c8, %c0_25], %37 {strides = array<i32>} : memref<36x384xbf16, #tpu.memory_space<vmem>>, vector<4x384xbf16>,
    %c0_i32_26 = arith.constant 0 : i32
    %c0_i32_27 = arith.constant 0 : i32
    %39 = tpu.memref_slice %arg6[%9, %c0_i32_26, %c0_i32_27] : memref<2x4x512xbf16, #tpu.memory_space<vmem>> -> memref<1x4x512xbf16, #tpu.memory_space<vmem>>
    %40 = tpu.memref_squeeze %39 : memref<1x4x512xbf16, #tpu.memory_space<vmem>> -> memref<4x512xbf16, #tpu.memory_space<vmem>>
    %c0_28 = arith.constant 0 : index
    %c18 = arith.constant 18 : index
    %41 = vector.load %40[%c0_28, %c18] : memref<4x512xbf16, #tpu.memory_space<vmem>>, vector<4x384xbf16>
    %c12 = arith.constant 12 : index
    %c0_29 = arith.constant 0 : index
    %42 = vector.load %arg7[%c12, %c0_29] : memref<36x384xbf16, #tpu.memory_space<vmem>>, vector<4x384xbf16>
    tpu.vector_store %arg7[%c12, %c0_29], %41 {strides = array<i32>} : memref<36x384xbf16, #tpu.memory_space<vmem>>, vector<4x384xbf16>,
    %c0_i32_30 = arith.constant 0 : i32
    %c0_i32_31 = arith.constant 0 : i32
    %43 = tpu.memref_slice %arg6[%9, %c0_i32_30, %c0_i32_31] : memref<2x4x512xbf16, #tpu.memory_space<vmem>> -> memref<1x4x512xbf16, #tpu.memory_space<vmem>>
    %44 = tpu.memref_squeeze %43 : memref<1x4x512xbf16, #tpu.memory_space<vmem>> -> memref<4x512xbf16, #tpu.memory_space<vmem>>
    %c0_32 = arith.constant 0 : index
    %c19 = arith.constant 19 : index
    %45 = vector.load %44[%c0_32, %c19] : memref<4x512xbf16, #tpu.memory_space<vmem>>, vector<4x384xbf16>
    %c16 = arith.constant 16 : index
    %c0_33 = arith.constant 0 : index
    %46 = vector.load %arg7[%c16, %c0_33] : memref<36x384xbf16, #tpu.memory_space<vmem>>, vector<4x384xbf16>
    tpu.vector_store %arg7[%c16, %c0_33], %45 {strides = array<i32>} : memref<36x384xbf16, #tpu.memory_space<vmem>>, vector<4x384xbf16>,
    %c0_i32_34 = arith.constant 0 : i32
    %c0_i32_35 = arith.constant 0 : i32
    %47 = tpu.memref_slice %arg6[%9, %c0_i32_34, %c0_i32_35] : memref<2x4x512xbf16, #tpu.memory_space<vmem>> -> memref<1x4x512xbf16, #tpu.memory_space<vmem>>
    %48 = tpu.memref_squeeze %47 : memref<1x4x512xbf16, #tpu.memory_space<vmem>> -> memref<4x512xbf16, #tpu.memory_space<vmem>>
    %c0_36 = arith.constant 0 : index
    %c20 = arith.constant 20 : index
    %49 = vector.load %48[%c0_36, %c20] : memref<4x512xbf16, #tpu.memory_space<vmem>>, vector<4x384xbf16>
    %c20_37 = arith.constant 20 : index
    %c0_38 = arith.constant 0 : index
    %50 = vector.load %arg7[%c20_37, %c0_38] : memref<36x384xbf16, #tpu.memory_space<vmem>>, vector<4x384xbf16>
    tpu.vector_store %arg7[%c20_37, %c0_38], %49 {strides = array<i32>} : memref<36x384xbf16, #tpu.memory_space<vmem>>, vector<4x384xbf16>,
    %c0_i32_39 = arith.constant 0 : i32
    %c0_i32_40 = arith.constant 0 : i32
    %51 = tpu.memref_slice %arg6[%9, %c0_i32_39, %c0_i32_40] : memref<2x4x512xbf16, #tpu.memory_space<vmem>> -> memref<1x4x512xbf16, #tpu.memory_space<vmem>>
    %52 = tpu.memref_squeeze %51 : memref<1x4x512xbf16, #tpu.memory_space<vmem>> -> memref<4x512xbf16, #tpu.memory_space<vmem>>
    %c0_41 = arith.constant 0 : index
    %c36 = arith.constant 36 : index
    %53 = vector.load %52[%c0_41, %c36] : memref<4x512xbf16, #tpu.memory_space<vmem>>, vector<4x384xbf16>
    %c24 = arith.constant 24 : index
    %c0_42 = arith.constant 0 : index
    %54 = vector.load %arg7[%c24, %c0_42] : memref<36x384xbf16, #tpu.memory_space<vmem>>, vector<4x384xbf16>
    tpu.vector_store %arg7[%c24, %c0_42], %53 {strides = array<i32>} : memref<36x384xbf16, #tpu.memory_space<vmem>>, vector<4x384xbf16>,
    %c0_i32_43 = arith.constant 0 : i32
    %c0_i32_44 = arith.constant 0 : i32
    %55 = tpu.memref_slice %arg6[%9, %c0_i32_43, %c0_i32_44] : memref<2x4x512xbf16, #tpu.memory_space<vmem>> -> memref<1x4x512xbf16, #tpu.memory_space<vmem>>
    %56 = tpu.memref_squeeze %55 : memref<1x4x512xbf16, #tpu.memory_space<vmem>> -> memref<4x512xbf16, #tpu.memory_space<vmem>>
    %c0_45 = arith.constant 0 : index
    %c37 = arith.constant 37 : index
    %57 = vector.load %56[%c0_45, %c37] : memref<4x512xbf16, #tpu.memory_space<vmem>>, vector<4x384xbf16>
    %c28 = arith.constant 28 : index
    %c0_46 = arith.constant 0 : index
    %58 = vector.load %arg7[%c28, %c0_46] : memref<36x384xbf16, #tpu.memory_space<vmem>>, vector<4x384xbf16>
    tpu.vector_store %arg7[%c28, %c0_46], %57 {strides = array<i32>} : memref<36x384xbf16, #tpu.memory_space<vmem>>, vector<4x384xbf16>,
    %c0_i32_47 = arith.constant 0 : i32
    %c0_i32_48 = arith.constant 0 : i32
    %59 = tpu.memref_slice %arg6[%9, %c0_i32_47, %c0_i32_48] : memref<2x4x512xbf16, #tpu.memory_space<vmem>> -> memref<1x4x512xbf16, #tpu.memory_space<vmem>>
    %60 = tpu.memref_squeeze %59 : memref<1x4x512xbf16, #tpu.memory_space<vmem>> -> memref<4x512xbf16, #tpu.memory_space<vmem>>
    %c0_49 = arith.constant 0 : index
    %c38 = arith.constant 38 : index
    %61 = vector.load %60[%c0_49, %c38] : memref<4x512xbf16, #tpu.memory_space<vmem>>, vector<4x384xbf16>
    %c32 = arith.constant 32 : index
    %c0_50 = arith.constant 0 : index
    %62 = vector.load %arg7[%c32, %c0_50] : memref<36x384xbf16, #tpu.memory_space<vmem>>, vector<4x384xbf16>
    tpu.vector_store %arg7[%c32, %c0_50], %61 {strides = array<i32>} : memref<36x384xbf16, #tpu.memory_space<vmem>>, vector<4x384xbf16>,
    %c0_51 = arith.constant 0 : index
    %c0_52 = arith.constant 0 : index
    %63 = vector.load %arg3[%c0_51, %c0_52] : memref<8x36xbf16, #tpu.memory_space<vmem>>, vector<8x36xbf16>
    %c0_53 = arith.constant 0 : index
    %c0_54 = arith.constant 0 : index
    %64 = vector.load %arg7[%c0_53, %c0_54] : memref<36x384xbf16, #tpu.memory_space<vmem>>, vector<36x384xbf16>
    %cst = arith.constant dense<0.000000e+00> : vector<8x384xf32>
    %65 = tpu.matmul %63, %64, %cst {dimension_numbers = #tpu.dot_dimension_numbers<[1], [0], [0], [1], [0, 0, 1, 1], [], []>} : vector<8x36xbf16>, vector<36x384xbf16>, vector<8x384xf32> -> vector<8x384xf32>
    %66 = arith.addf %65, %26 : vector<8x384xf32>
    %cst_55 = arith.constant 0.000000e+00 : f32
    %67 = vector.broadcast %cst_55 : f32 to vector<8x384xf32>
    %68 = arith.maximumf %66, %67 : vector<8x384xf32>
    %c0_56 = arith.constant 0 : index
    %c0_57 = arith.constant 0 : index
    %c0_58 = arith.constant 0 : index
    %69 = vector.load %arg5[%c0_56, %c0_57, %c0_58] : memref<1x8x384xf32, #tpu.memory_space<vmem>>, vector<1x8x384xf32>
    %70 = vector.shape_cast %69 : vector<1x8x384xf32> to vector<8x384xf32>
    %71 = vector.shape_cast %68 : vector<8x384xf32> to vector<1x8x384xf32>
    tpu.vector_store %arg5[%c0_56, %c0_57, %c0_58], %71 {strides = array<i32>} : memref<1x8x384xf32, #tpu.memory_space<vmem>>, vector<1x8x384xf32>,
    return
  }
  func.func @transform_1(%arg0: i32, %arg1: i32) -> (i32, i32) {
    %c0_i32 = arith.constant 0 : i32
    %c0_i32_0 = arith.constant 0 : i32
    %c0_i32_1 = arith.constant 0 : i32
    return %c0_i32, %c0_i32_0 : i32, i32
  }
  func.func @transform_2(%arg0: i32, %arg1: i32) -> (i32, i32) {
    %c0_i32 = arith.constant 0 : i32
    %c0_i32_0 = arith.constant 0 : i32
    %c0_i32_1 = arith.constant 0 : i32
    return %c0_i32, %c0_i32_0 : i32, i32
  }
  func.func @transform_3(%arg0: i32, %arg1: i32) -> (i32, i32, i32) {
    %c0_i32 = arith.constant 0 : i32
    %c0_i32_0 = arith.constant 0 : i32
    return %arg0, %c0_i32, %arg1 : i32, i32, i32
  }
}

</mosaic_0001>

<llo_original>
// kernel: tpu_custom_call.1
$region0: #{tpu_custom_call.1}
  #allocation0 [shape = 'u32[]', space=smem, size = 0x4, offset = 0x4, fixed_abs, tag = 'smem constant byte address 0x4 - core index']
  #allocation1 [shape = 'u32[72,128]{1,0:T(1,128)}', space=vmem, size = 0x9000, scoped, tag = 'internal scratch']
  #allocation2 [shape = 'bf16[2,4,512]{2,1,0:T(4,128)(2,1)}', space=vmem, size = 0x2000, scoped, tag = 'scratch operand']
  #allocation3 [shape = 'bf16[36,384]{1,0:T(8,128)(2,1)}', space=vmem, size = 0x7800, scoped, tag = 'scratch operand']
  #allocation4 [shape = 's32[2]{0}', space=sflag, size = 0x8, scoped, tag = 'scratch operand']
  #allocation7 [shape = 's32[]', space=sflag, size = 0x4, offset = 0, fixed_abs, tag = 'sflag constant byte address 0x0 - dummy sync flag']
  #allocation8 [shape = 's32[]', space=sflag, size = 0x4, offset = 0, fixed_abs, tag = 'sflag constant byte address 0x0 - dummy sync flag']
  #allocation9 [shape = 'u32[]', space=smem, size = 0x4, offset = 0x44, fixed_abs, tag = 'smem constant byte address 0x44 - assertion arg 0']
  #allocation10 [shape = 'u32[]', space=smem, size = 0x4, offset = 0x48, fixed_abs, tag = 'smem constant byte address 0x48 - assertion arg 1']
  #allocation11 [shape = 's32[]', space=sflag, size = 0x4, offset = 0, fixed_abs, tag = 'sflag constant byte address 0x0 - dummy sync flag']
  #allocation12 [shape = 's32[]', space=sflag, size = 0x4, offset = 0, fixed_abs, tag = 'sflag constant byte address 0x0 - dummy sync flag']
  %s0 = inlined_call_operand.hbm [shape: bf16[2,4,512], index: 0, kind: input, shape index: {}]
  %s1 = inlined_call_operand.vmem [shape: bf16[8,36], index: 1, kind: input, shape index: {}]
  %s2 = inlined_call_operand.vmem [shape: f32[8,1], index: 2, kind: input, shape index: {}]
  %s3 = inlined_call_operand.hbm [shape: f32[2,8,384], index: 3, kind: output, shape index: {}]
  %s4 = sld [smem:[#allocation0]]
  $region57: #{tpu_custom_call.1} parent=0
    _
  %s6 = ssub.s32 1, %s4
  %s7 = scalar_select 0, %s6, %s4
  $region1: #{tpu_custom_call.1} parent=0
    #allocation5 [shape = 'u8[24576]{0}', space=vmem, size = 0x6000, scoped, tag = 'output window, operand 0']
    #allocation6 [shape = 's32[2]{0}', space=sflag, size = 0x8, scoped, tag = 'scoped memory for tpu_custom_call.1']
    %8 = vsyncpa [#allocation6], 0
    %s9 = scalar_lea.sflag [#allocation6], 1
    %10 = vsyncpa %s9, 0
    loop: start=0, step=1, limit=4
    $region2: #{tpu_custom_call.1} parent=1 // loop_pre_header
      _
    $region3: #{tpu_custom_call.1} parent=1 // loop_header
      %s12 = sphi 0, %s16
      %p13 = scmp.ge.s32.totalorder %s12, 4
      %s19 = sphi 0, %s31
      %s20 = sphi 0, %s27
      %s21 = sphi 0, %s19
      %s22 = sphi 0, %s20
      %s23 = sphi 0, %s21
      %s24 = sphi 0, %s22
      %s32 = sphi 0, %s32
      %s34 = sphi 0, %s32
      %s35 = sphi 0, %s34
      %s49 = sphi 0, %s35
      %s53 = sphi 0, %s53
      %s55 = sphi 0, %s53
      %s56 = sphi 0, %s55
      %s70 = sphi 0, %s56
      %s78 = sphi 0, %s80
      %s81 = sphi 0, %s78
      %s82 = sphi 0, %s81
      %s98 = sphi 0, %s82
    $region4: #{tpu_custom_call.1} parent=1 // loop_header_branch
      %15 = sbr.rel (%p13) target = $region8
    $region5: #{tpu_custom_call.1} parent=1 // loop_body
      %s17 = ssub.s32 %s12, 1
      %s18 = ssub.s32 %s12, 2
      %s25 = sadd.s32 1, %s20
      %p26 = scmp.ge.s32.totalorder %s25, 1
      %s27 = scalar_select %p26, 0, %s25
      %s28 = sadd.s32 1, %s19
      %s29 = scalar_select %p26, %s28, %s19
      %p30 = scmp.ge.s32.totalorder %s29, 2
      %s31 = scalar_select %p30, 0, %s29
      %s33 = sadd.s32 %s32, 1
      %p36 = scmp.eq.s32.totalorder %s12, 1
      %p37 = scmp.ne.s32.totalorder %s32, %s34
      %p38 = scmp.eq.s32.totalorder %s12, 0
      %p39 = por %p37, %p38
      %p40 = scmp.ne.s32.totalorder %s32, %s34
      %p41 = scmp.eq.s32.totalorder %s17, 1
      %p42 = por %p40, %p41
      %p43 = scmp.ne.s32.totalorder %s34, %s35
      %p44 = scmp.eq.s32.totalorder %s17, 0
      %p45 = por %p43, %p44
      %p46 = scmp.ne.s32.totalorder %s34, %s35
      %p47 = scmp.eq.s32.totalorder %s18, 1
      %p48 = por %p46, %p47
      %p50 = scmp.ne.s32.totalorder %s35, %s49
      %p51 = scmp.eq.s32.totalorder %s18, 0
      %p52 = por %p50, %p51
      %s54 = sadd.s32 %s53, 1
      %p57 = scmp.eq.s32.totalorder %s12, 1
      %p58 = scmp.ne.s32.totalorder %s53, %s55
      %p59 = scmp.eq.s32.totalorder %s12, 0
      %p60 = por %p58, %p59
      %p61 = scmp.ne.s32.totalorder %s53, %s55
      %p62 = scmp.eq.s32.totalorder %s17, 1
      %p63 = por %p61, %p62
      %p64 = scmp.ne.s32.totalorder %s55, %s56
      %p65 = scmp.eq.s32.totalorder %s17, 0
      %p66 = por %p64, %p65
      %p67 = scmp.ne.s32.totalorder %s55, %s56
      %p68 = scmp.eq.s32.totalorder %s18, 1
      %p69 = por %p67, %p68
      %p71 = scmp.ne.s32.totalorder %s56, %s70
      %p72 = scmp.eq.s32.totalorder %s18, 0
      %p73 = por %p71, %p72
      %s74 = ssub.s32 %s19, %s31
      %s75 = ssub.s32 %s20, %s27
      %s76 = sor.u32 %s74, %s75
      %p77 = scmp.eq.s32.totalorder %s76, 0
      %s79 = sadd.s32 %s78, 1
      %s80 = scalar_select %p77, %s78, %s79
      %p83 = pneg %p77
      %p84 = scmp.eq.s32.totalorder %s12, 1
      %p85 = por %p83, %p84
      %p86 = scmp.ne.s32.totalorder %s78, %s81
      %p87 = scmp.eq.s32.totalorder %s12, 0
      %p88 = por %p86, %p87
      %p89 = scmp.ne.s32.totalorder %s78, %s81
      %p90 = scmp.eq.s32.totalorder %s17, 1
      %p91 = por %p89, %p90
      %p92 = scmp.ne.s32.totalorder %s81, %s82
      %p93 = scmp.eq.s32.totalorder %s17, 0
      %p94 = por %p92, %p93
      %p95 = scmp.ne.s32.totalorder %s81, %s82
      %p96 = scmp.eq.s32.totalorder %s18, 1
      %p97 = por %p95, %p96
      %p99 = scmp.ne.s32.totalorder %s82, %s98
      %p100 = scmp.eq.s32.totalorder %s18, 0
      %p101 = por %p99, %p100
      %p102 = scmp.le.s32.totalorder 1, %s12
      %p103 = scmp.lt.s32.totalorder %s12, 3
      %p104 = pnand %p102, %p103
      %p105 = pneg %p104
      // Predicated region
      $region9: #{tpu_custom_call.1} parent=5 // pred_check
        _
      $region10: #{tpu_custom_call.1} parent=5 // pred_check_branch
        %107 = sbr.rel (%p104) target = $region12
      $region11: #{tpu_custom_call.1} parent=5 // pred_region
        %s108 = ssub.s32 %s12, 1
        // Predicated region
        $region13: #{tpu_custom_call.1} parent=11 // pred_check
          %p109 = pneg %p45
        $region14: #{tpu_custom_call.1} parent=11 // pred_check_branch
          %111 = sbr.rel (%p109) target = $region16
        $region15: #{tpu_custom_call.1} parent=11 // pred_region
          _
        $region16: #{tpu_custom_call.1} parent=11 // pred_fallthru
          _
        // Predicated region
        $region17: #{tpu_custom_call.1} parent=11 // pred_check
          %p112 = pneg %p66
        $region18: #{tpu_custom_call.1} parent=11 // pred_check_branch
          %114 = sbr.rel (%p112) target = $region20
        $region19: #{tpu_custom_call.1} parent=11 // pred_region
          _
        $region20: #{tpu_custom_call.1} parent=11 // pred_fallthru
          _
      $region12: #{tpu_custom_call.1} parent=5 // pred_fallthru
        _
      %p115 = scmp.lt.s32.totalorder %s12, 2
      // Predicated region
      $region21: #{tpu_custom_call.1} parent=5 // pred_check
        %p116 = pneg %p115
      $region22: #{tpu_custom_call.1} parent=5 // pred_check_branch
        %118 = sbr.rel (%p116) target = $region24
      $region23: #{tpu_custom_call.1} parent=5 // pred_region
        _
      $region24: #{tpu_custom_call.1} parent=5 // pred_fallthru
        _
      %p119 = scmp.le.s32.totalorder 1, %s12
      %p120 = scmp.lt.s32.totalorder %s12, 3
      %p121 = pnand %p119, %p120
      %p122 = pneg %p121
      // Predicated region
      $region25: #{tpu_custom_call.1} parent=5 // pred_check
        _
      $region26: #{tpu_custom_call.1} parent=5 // pred_check_branch
        %124 = sbr.rel (%p121) target = $region28
      $region27: #{tpu_custom_call.1} parent=5 // pred_region
        %s125 = ssub.s32 %s12, 1
        %p126 = pneg %p45
        %p127 = pneg %p42
        %p128 = pneg %p66
        %p129 = pneg %p63
        %p130 = pneg %p94
        %p131 = pneg %p91
        %s132 = sand.u32 %s81, 1
        %s133 = scalar_lea.sflag [#allocation6], %s132
        %s134 = sand.u32 %s81, 1
        %s135 = smul.addr %s134, 24
        %s136 = scalar_lea.vmem [#allocation5], %s135
        %s137 = smul.u32 3, %s22
        %p139 = scmp.lt.s32.totalorder %s22, 0
        %s140 = ssub.s32 0, %s22
        %s141 = scalar_select %p139, %s140, %s22
        %s142 = sand.u32 %s141, 1
        %s143 = ssub.s32 0, %s142
        %s144 = scalar_select %p139, %s143, %s142
        %p145 = scmp.ne.s32.totalorder %s144, 0
        %p146 = scmp.lt.s32.totalorder %s144, 0
        %p147 = pnand %p146, %p145
        %p148 = pneg %p147
        %s149 = sadd.s32 %s144, 2
        %s150 = scalar_select %p148, %s149, %s144
        %p151 = scmp.eq.s32.totalorder %s22, 0
        // Predicated region
        $region29: #{tpu_custom_call.1} parent=27 // pred_check
          %p152 = pneg %p151
        $region30: #{tpu_custom_call.1} parent=27 // pred_check_branch
          %154 = sbr.rel (%p152) target = $region32
        $region31: #{tpu_custom_call.1} parent=27 // pred_region
          %s155 = smul.u32 %s21, 4
          %s156 = smul.addr %s155, 2
          %s157 = scalar_lea.hbm %s0, %s156
          // Predicated region
          $region33: #{tpu_custom_call.1} parent=31 // pred_check
            _
          $region34: #{tpu_custom_call.1} parent=31 // pred_check_branch
            %159 = sbr.rel target = $region36
          $region35: #{tpu_custom_call.1} parent=31 // pred_region
            %160 = sst [smem:[#allocation9]] [#allocation8]
            %161 = sst [smem:[#allocation10]] [#allocation7]
          $region36: #{tpu_custom_call.1} parent=31 // pred_fallthru
            _
          %163 = shalt.err (0)
          %s165 = sshll.u32 %s157, 4
          %s166 = int_to_ptr.hbm [resolvable:$true] %s165
          %s167 = sshll.u32 [#allocation2], 4
          %s168 = int_to_ptr.vmem [resolvable:$true] %s167
          %170 = dma.hbm_to_vmem [thread:$0]  %s166, 128, %s168, [#allocation4]
        $region32: #{tpu_custom_call.1} parent=27 // pred_fallthru
          _
        %s171 = sadd.s32 %s22, 1
        %p172 = scmp.lt.s32.totalorder %s171, 1
        // Predicated region
        $region37: #{tpu_custom_call.1} parent=27 // pred_check
          %p173 = pneg %p172
        $region38: #{tpu_custom_call.1} parent=27 // pred_check_branch
          %175 = sbr.rel (%p173) target = $region40
        $region39: #{tpu_custom_call.1} parent=27 // pred_region
          %s176 = ssub.s32 1, %s150
          %s177 = smul.u32 %s171, 384
          %s178 = sshra.s32 %s177, 7
          %s179 = sand.u32 %s177, 127
          %s180 = smul.u32 %s21, 4
          %s181 = sadd.s32 %s178, %s180
          %s182 = smul.addr %s181, 2
          %s183 = scalar_lea.hbm %s0, %s182
          %s184 = smul.u32 %s176, 4
          %s185 = smul.addr %s184, 2
          %s186 = scalar_lea.vmem [#allocation2], %s185
          %s187 = scalar_lea.sflag [#allocation4], %s176
          // Predicated region
          $region41: #{tpu_custom_call.1} parent=39 // pred_check
            _
          $region42: #{tpu_custom_call.1} parent=39 // pred_check_branch
            %189 = sbr.rel target = $region44
          $region43: #{tpu_custom_call.1} parent=39 // pred_region
            %190 = sst [smem:[#allocation9]] [#allocation12]
            %191 = sst [smem:[#allocation10]] [#allocation11]
          $region44: #{tpu_custom_call.1} parent=39 // pred_fallthru
            _
          %193 = shalt.err (0)
          %s195 = sshll.u32 %s183, 4
          %s196 = int_to_ptr.hbm [resolvable:$true] %s195
          %s197 = sshll.u32 %s186, 4
          %s198 = int_to_ptr.vmem [resolvable:$true] %s197
          %200 = dma.hbm_to_vmem [thread:$0]  %s196, 128, %s198, %s187
        $region40: #{tpu_custom_call.1} parent=27 // pred_fallthru
          _
        %s201 = smul.u32 %s150, 4
        %s202 = smul.addr %s201, 2
        %s203 = scalar_lea.vmem [#allocation2], %s202
        %s204 = scalar_lea.sflag [#allocation4], %s150
        %s205 = smul.u32 2, 1
        %s206 = smul.u32 %s205, 4
        %s207 = sshll.u32 %s206, 4
        %208 = dma.done %s204, %s207
        %v209 = vld [vmem:[%s2] sm:$0xff]
        %211 = vset.pattern.permute.xlu0 0
        %212 = vperm.xlu0 %211, %v209
        %v213 = vpop.permute.xlu0 %212
        %v215 = vld [vmem:[%s203] sm:$0x3f]
        %217 = vst [vmem:[#allocation1] ss:$2 sm:$0xff] %v215
        %v218 = vld.sshfl [vmem:[#allocation1] sm:$0xff pattern:$0x75643120]
        %v219 = vld.sshfl [vmem:[#allocation1 + $0x8] sm:$0xff pattern:$0x75643120]
        %222 = vst [vmem:[#allocation3] sm:$0x33] %v218
        %223 = vst [vmem:[#allocation3 + $0x8] sm:$0x3] %v219
        %v224 = vld [vmem:[%s203] sm:$0xff]
        %s226 = scalar_lea.vmem [#allocation1], 1
        %227 = vst [vmem:[%s226] ss:$2 sm:$0xff] %v224
        %v228 = vld.sshfl [vmem:[#allocation1] sm:$0xff pattern:$0x75643120]
        %v230 = vld.sshfl [vmem:[#allocation1 + $0x8] sm:$0xff pattern:$0x75643120]
        %232 = vrot.lane.b32.xlu0 %v228, 127
        %v233 = vpop.permute.xlu0 %232
        %234 = vrot.lane.b32.xlu0 %v230, 127
        %v235 = vpop.permute.xlu0 %234
        %v236 = vrot.slane %v233, 4
        %v237 = vrot.slane %v235, 4
        %vm238 = vcmask 1043456
        %v239 = vsel %vm238, %v236, %v237
        %vm240 = vcmask 1039360
        %v241 = vsel %vm240, %v233, %v239
        %v242 = vsel %vm240, %v235, %v237
        %245 = vst [vmem:[#allocation3] sm:$0xcc] %v241
        %246 = vst [vmem:[#allocation3 + $0x8] sm:$0xc] %v242
        %v247 = vld [vmem:[%s203] sm:$0xff]
        %249 = vst [vmem:[#allocation1] ss:$2 sm:$0xff] %v247
        %v250 = vld.sshfl [vmem:[#allocation1] sm:$0xff pattern:$0x75643120]
        %v252 = vld.sshfl [vmem:[#allocation1 + $0x8] sm:$0xff pattern:$0x75643120]
        %254 = vrot.lane.b32.xlu0 %v250, 126
        %v255 = vpop.permute.xlu0 %254
        %256 = vrot.lane.b32.xlu0 %v252, 126
        %v257 = vpop.permute.xlu0 %256
        %v258 = vrot.slane %v255, 4
        %v259 = vrot.slane %v257, 4
        %v260 = vsel %vm238, %v258, %v259
        %vm261 = vcmask 1031168
        %v262 = vsel %vm261, %v255, %v260
        %v263 = vsel %vm261, %v257, %v259
        %266 = vst [vmem:[#allocation3 + $0xc] sm:$0x33] %v262
        %267 = vst [vmem:[#allocation3 + $0x14] sm:$0x3] %v263
        %v268 = vld [vmem:[%s203] sm:$0xff]
        %s270 = scalar_lea.vmem [#allocation1], 1
        %271 = vst [vmem:[%s270] ss:$2 sm:$0xff] %v268
        %v272 = vld.sshfl [vmem:[#allocation1] sm:$0xff pattern:$0x75643120]
        %v274 = vld.sshfl [vmem:[#allocation1 + $0x8] sm:$0xff pattern:$0x75643120]
        %276 = vrot.lane.b32.xlu0 %v272, 110
        %v277 = vpop.permute.xlu0 %276
        %278 = vrot.lane.b32.xlu0 %v274, 110
        %v279 = vpop.permute.xlu0 %278
        %v280 = vrot.slane %v277, 4
        %v281 = vrot.slane %v279, 4
        %v282 = vsel %vm238, %v280, %v281
        %vm283 = vcmask 900096
        %v284 = vsel %vm283, %v277, %v282
        %v285 = vsel %vm283, %v279, %v281
        %288 = vst [vmem:[#allocation3 + $0xc] sm:$0xcc] %v284
        %289 = vst [vmem:[#allocation3 + $0x14] sm:$0xc] %v285
        %v290 = vld [vmem:[%s203] sm:$0xff]
        %292 = vst [vmem:[#allocation1] ss:$2 sm:$0xff] %v290
        %v293 = vld.sshfl [vmem:[#allocation1] sm:$0xff pattern:$0x75643120]
        %v295 = vld.sshfl [vmem:[#allocation1 + $0x8] sm:$0xff pattern:$0x75643120]
        %297 = vrot.lane.b32.xlu0 %v293, 109
        %v298 = vpop.permute.xlu0 %297
        %299 = vrot.lane.b32.xlu0 %v295, 109
        %v300 = vpop.permute.xlu0 %299
        %v301 = vrot.slane %v298, 4
        %v302 = vrot.slane %v300, 4
        %v303 = vsel %vm238, %v301, %v302
        %vm304 = vcmask 891904
        %v305 = vsel %vm304, %v298, %v303
        %v306 = vsel %vm304, %v300, %v302
        %309 = vst [vmem:[#allocation3 + $0x18] sm:$0x33] %v305
        %310 = vst [vmem:[#allocation3 + $0x20] sm:$0x3] %v306
        %v311 = vld [vmem:[%s203] sm:$0xff]
        %s313 = scalar_lea.vmem [#allocation1], 1
        %314 = vst [vmem:[%s313] ss:$2 sm:$0xff] %v311
        %v315 = vld.sshfl [vmem:[#allocation1] sm:$0xff pattern:$0x75643120]
        %v317 = vld.sshfl [vmem:[#allocation1 + $0x8] sm:$0xff pattern:$0x75643120]
        %319 = vrot.lane.b32.xlu0 %v315, 108
        %v320 = vpop.permute.xlu0 %319
        %321 = vrot.lane.b32.xlu0 %v317, 108
        %v322 = vpop.permute.xlu0 %321
        %v323 = vrot.slane %v320, 4
        %v324 = vrot.slane %v322, 4
        %v325 = vsel %vm238, %v323, %v324
        %vm326 = vcmask 883712
        %v327 = vsel %vm326, %v320, %v325
        %v328 = vsel %vm326, %v322, %v324
        %331 = vst [vmem:[#allocation3 + $0x18] sm:$0xcc] %v327
        %332 = vst [vmem:[#allocation3 + $0x20] sm:$0xc] %v328
        %v333 = vld [vmem:[%s203] sm:$0xff]
        %335 = vst [vmem:[#allocation1] ss:$2 sm:$0xff] %v333
        %v336 = vld.sshfl [vmem:[#allocation1] sm:$0xff pattern:$0x75643120]
        %v338 = vld.sshfl [vmem:[#allocation1 + $0x8] sm:$0xff pattern:$0x75643120]
        %340 = vrot.lane.b32.xlu0 %v336, 92
        %v341 = vpop.permute.xlu0 %340
        %342 = vrot.lane.b32.xlu0 %v338, 92
        %v343 = vpop.permute.xlu0 %342
        %v344 = vrot.slane %v341, 4
        %v345 = vrot.slane %v343, 4
        %v346 = vsel %vm238, %v344, %v345
        %vm347 = vcmask 752640
        %v348 = vsel %vm347, %v341, %v346
        %v349 = vsel %vm347, %v343, %v345
        %352 = vst [vmem:[#allocation3 + $0x24] sm:$0x33] %v348
        %353 = vst [vmem:[#allocation3 + $0x2c] sm:$0x3] %v349
        %v354 = vld [vmem:[%s203] sm:$0xff]
        %s356 = scalar_lea.vmem [#allocation1], 1
        %357 = vst [vmem:[%s356] ss:$2 sm:$0xff] %v354
        %v358 = vld.sshfl [vmem:[#allocation1] sm:$0xff pattern:$0x75643120]
        %v360 = vld.sshfl [vmem:[#allocation1 + $0x8] sm:$0xff pattern:$0x75643120]
        %362 = vrot.lane.b32.xlu0 %v358, 91
        %v363 = vpop.permute.xlu0 %362
        %364 = vrot.lane.b32.xlu0 %v360, 91
        %v365 = vpop.permute.xlu0 %364
        %v366 = vrot.slane %v363, 4
        %v367 = vrot.slane %v365, 4
        %v368 = vsel %vm238, %v366, %v367
        %vm369 = vcmask 744448
        %v370 = vsel %vm369, %v363, %v368
        %v371 = vsel %vm369, %v365, %v367
        %374 = vst [vmem:[#allocation3 + $0x24] sm:$0xcc] %v370
        %375 = vst [vmem:[#allocation3 + $0x2c] sm:$0xc] %v371
        %v376 = vld [vmem:[%s203] sm:$0xff]
        %378 = vst [vmem:[#allocation1] ss:$2 sm:$0xff] %v376
        %v379 = vld.sshfl [vmem:[#allocation1] sm:$0xff pattern:$0x75643120]
        %v381 = vld.sshfl [vmem:[#allocation1 + $0x8] sm:$0xff pattern:$0x75643120]
        %383 = vrot.lane.b32.xlu0 %v379, 90
        %v384 = vpop.permute.xlu0 %383
        %385 = vrot.lane.b32.xlu0 %v381, 90
        %v386 = vpop.permute.xlu0 %385
        %v387 = vrot.slane %v384, 4
        %v388 = vrot.slane %v386, 4
        %v389 = vsel %vm238, %v387, %v388
        %vm390 = vcmask 736256
        %v391 = vsel %vm390, %v384, %v389
        %v392 = vsel %vm390, %v386, %v388
        %395 = vst [vmem:[#allocation3 + $0x30] sm:$0x33] %v391
        %396 = vst [vmem:[#allocation3 + $0x38] sm:$0x3] %v392
        %v397 = vld [vmem:[%s1] sm:$0xf]
        %v398 = vld [vmem:[#allocation3] sm:$0xff]
        %v399 = vld [vmem:[#allocation3 + $0x8] sm:$0xf]
        %v400 = vld [vmem:[#allocation3 + $0xc] sm:$0xff]
        %v401 = vld [vmem:[#allocation3 + $0x14] sm:$0xf]
        %v402 = vld [vmem:[#allocation3 + $0x18] sm:$0xff]
        %v403 = vld [vmem:[#allocation3 + $0x20] sm:$0xf]
        %v404 = vld [vmem:[#allocation3 + $0x24] sm:$0xff]
        %v405 = vld [vmem:[#allocation3 + $0x2c] sm:$0xf]
        %v406 = vld [vmem:[#allocation3 + $0x30] sm:$0x33]
        %v407 = vld [vmem:[#allocation3 + $0x38] sm:$0x3]
        %v418 = vunpack.c.l.b16 %v398
        %v419 = vunpack.c.h.b16 %v398
        %v420 = vunpack.c.l.b16 %v399
        %v421 = vunpack.c.l.b16 %v400
        %v422 = vunpack.c.h.b16 %v400
        %v423 = vunpack.c.l.b16 %v401
        %v424 = vunpack.c.l.b16 %v402
        %v425 = vunpack.c.h.b16 %v402
        %v426 = vunpack.c.l.b16 %v403
        %v427 = vunpack.c.l.b16 %v404
        %v428 = vunpack.c.h.b16 %v404
        %v429 = vunpack.c.l.b16 %v405
        %v430 = vunpack.c.l.b16 %v406
        %v431 = vunpack.c.h.b16 %v406
        %v432 = vunpack.c.l.b16 %v407
        %v433 = vpack.c.b16 %v421, %v418
        %v434 = vpack.c.b16 %v422, %v419
        %v435 = vpack.c.b16 %v423, %v420
        %v436 = vpack.c.b16 %v427, %v424
        %v437 = vpack.c.b16 %v428, %v425
        %v438 = vpack.c.b16 %v429, %v426
        %v439 = vpack.c.b16 %v430, %v430
        %v440 = vpack.c.b16 %v431, %v431
        %v441 = vpack.c.b16 %v432, %v432
        %vm448 = vcmask 293888
        %v450 = vsel %vm448, %v397, 0
        %vm452 = vcmask 1041408
        %v454 = vsel %vm452, %v439, 0
        %v457 = vsel %vm452, %v440, 0
        %v460 = vsel %vm452, %v441, 0
        %462 = vmatpush.bf16.msra.mxu0 0
        %463 = vmatpush.bf16.msra.mxu0 0
        %464 = vmatpush.bf16.msra.mxu0 0
        %465 = vmatpush.bf16.msra.mxu0 0
        %466 = vmatpush.bf16.msra.mxu0 0
        %467 = vmatpush.bf16.msra.mxu0 %v454
        %468 = vmatpush.bf16.msra.mxu0 %v436
        %469 = vmatpush.bf16.msra.mxu0 %v433
        %470 = vmatmul.bf16.gmra.mxu0 %v450
        %v471 = vpop.f32.mrf.mxu0
        %v472 = vadd.f32 %v213, %v471
        %v473 = vpop.f32.mrf.mxu0
        %474 = vdwg.mxu0
        %475 = vmatpush.bf16.msra.mxu0 0
        %476 = vmatpush.bf16.msra.mxu0 0
        %477 = vmatpush.bf16.msra.mxu0 0
        %478 = vmatpush.bf16.msra.mxu0 0
        %479 = vmatpush.bf16.msra.mxu0 0
        %480 = vmatpush.bf16.msra.mxu0 %v457
        %481 = vmatpush.bf16.msra.mxu0 %v437
        %482 = vmatpush.bf16.msra.mxu0 %v434
        %483 = vmatmul.bf16.gmra.mxu0 %v450
        %v484 = vpop.f32.mrf.mxu0
        %v485 = vadd.f32 %v213, %v484
        %v486 = vpop.f32.mrf.mxu0
        %487 = vdwg.mxu0
        %488 = vmatpush.bf16.msra.mxu0 0
        %489 = vmatpush.bf16.msra.mxu0 0
        %490 = vmatpush.bf16.msra.mxu0 0
        %491 = vmatpush.bf16.msra.mxu0 0
        %492 = vmatpush.bf16.msra.mxu0 0
        %493 = vmatpush.bf16.msra.mxu0 %v460
        %494 = vmatpush.bf16.msra.mxu0 %v438
        %495 = vmatpush.bf16.msra.mxu0 %v435
        %496 = vmatmul.bf16.gmra.mxu0 %v450
        %v497 = vpop.f32.mrf.mxu0
        %v498 = vadd.f32 %v213, %v497
        %v499 = vpop.f32.mrf.mxu0
        %500 = vdwg.mxu0
        %v501 = vmax.f32 %v472, 0.0
        %v502 = vmax.f32 %v485, 0.0
        %v503 = vmax.f32 %v498, 0.0
        %504 = vst [vmem:[%s136] sm:$0xff] %v501
        %505 = vst [vmem:[%s136 + $0x8] sm:$0xff] %v502
        %506 = vst [vmem:[%s136 + $0x10] sm:$0xff] %v503
        %s507 = sand.u32 %s81, 1
        %s508 = scalar_lea.sflag [#allocation6], %s507
        %s509 = sand.u32 %s81, 1
        %s510 = smul.addr %s509, 24
        %s511 = scalar_lea.vmem [#allocation5], %s510
        // Predicated region
        $region45: #{tpu_custom_call.1} parent=27 // pred_check
          %p512 = pneg %p91
        $region46: #{tpu_custom_call.1} parent=27 // pred_check_branch
          %514 = sbr.rel (%p512) target = $region48
        $region47: #{tpu_custom_call.1} parent=27 // pred_region
          %s515 = smul.u32 3, %s22
          %517 = vsyncadd %s508, 0
          %s518 = smul.addr %s21, 3
          %s519 = sadd.s32 %s515, %s518
          %s520 = smul.addr %s519, 8
          %s521 = scalar_lea.hbm %s3, %s520
          %s523 = sshll.u32 %s511, 4
          %s524 = int_to_ptr.vmem [resolvable:$true] %s523
          %s525 = sshll.u32 %s521, 4
          %s526 = int_to_ptr.hbm [resolvable:$true] %s525
          %528 = dma.vmem_to_hbm [thread:$0]  %s524, 384, %s526, %s508
        $region48: #{tpu_custom_call.1} parent=27 // pred_fallthru
          _
      $region28: #{tpu_custom_call.1} parent=5 // pred_fallthru
        _
      %p529 = scmp.le.s32.totalorder 2, %s12
      // Predicated region
      $region49: #{tpu_custom_call.1} parent=5 // pred_check
        %p530 = pneg %p529
      $region50: #{tpu_custom_call.1} parent=5 // pred_check_branch
        %532 = sbr.rel (%p530) target = $region52
      $region51: #{tpu_custom_call.1} parent=5 // pred_region
        %s533 = ssub.s32 %s12, 2
        // Predicated region
        $region53: #{tpu_custom_call.1} parent=51 // pred_check
          %p534 = pneg %p97
        $region54: #{tpu_custom_call.1} parent=51 // pred_check_branch
          %536 = sbr.rel (%p534) target = $region56
        $region55: #{tpu_custom_call.1} parent=51 // pred_region
          %s537 = sand.u32 %s82, 1
          %s538 = scalar_lea.sflag [#allocation6], %s537
          %s539 = sand.u32 %s82, 1
          %s540 = smul.addr %s539, 24
          %s541 = scalar_lea.vmem [#allocation5], %s540
          %543 = dma.done %s538, 384
        $region56: #{tpu_custom_call.1} parent=51 // pred_fallthru
          _
      $region52: #{tpu_custom_call.1} parent=5 // pred_fallthru
        _
    $region6: #{tpu_custom_call.1} parent=1 // loop_footer
      %s16 = sadd.s32 1, %s12
    $region7: #{tpu_custom_call.1} parent=1 // loop_footer_branch
      %11 = sbr.rel target = $region3
    $region8: #{tpu_custom_call.1} parent=1 // loop_exit
      _
    %544 = vsyncpa [#allocation6], 1
    %s545 = scalar_lea.sflag [#allocation6], 1
    %546 = vsyncpa %s545, 1
  %547 = vsyncmov [#allocation4]
  %s548 = vpop.sfrf %547
  %p549 = scmp.eq.s32.totalorder %s548, 0
  %p550 = pneg %p549
  %552 = shalt.err (%p550)
  %s553 = scalar_lea.sflag [#allocation4], 1
  %554 = vsyncmov %s553
  %s555 = vpop.sfrf %554
  %p556 = scmp.eq.s32.totalorder %s555, 0
  %p557 = pneg %p556
  %559 = shalt.err (%p557)

</llo_original>
